<compile_context>
chip_gen: v6e
topology: v6e:2x2x1
jax: 0.10.0
libtpu: 0.0.40
codegen_flags: <defaults>
</compile_context>

<pallas_src>
import functools

import jax
import jax.numpy as jnp
from jax.experimental import pallas as pl
from jax.experimental.pallas import tpu as pltpu


def _round_up(n, m):
    return ((n + m - 1) // m) * m


def mlp_kernel(x_ref, w1_ref, b1_ref, w2_ref, b2_ref, o_ref):
    """Fused fc1 -> ReLU -> fc2 on one (TB, in_f) batch tile, all in f32."""
    x = x_ref[...]                                    # (TB, in_f) f32
    w1 = w1_ref[...]                                  # (in_f, hid) f32
    tb = x.shape[0]
    in_f = x.shape[1]
    hid = w1.shape[1]

    # fc1 on the VPU: K=in_f (e.g. 3) would waste the MXU's systolic depth and
    # pay a full push/pop round trip; in_f broadcast FMAs are effectively free.
    h = jnp.broadcast_to(b1_ref[...], (tb, hid))      # hoisted bias broadcast
    for k in range(in_f):                             # static unroll (in_f tiny)
        h = h + x[:, k:k + 1] * w1[k:k + 1, :]
    h = jnp.maximum(h, 0.0)                           # ReLU

    # fc2 on the MXU (K = hid), f32 accumulate; store only the real class cols.
    out = jnp.dot(h, w2_ref[...], preferred_element_type=jnp.float32)
    o_ref[...] = (out + b2_ref[...]).astype(o_ref.dtype)


@functools.partial(jax.jit, static_argnames=("tb",))
def trained_model_forward(x, w1, b1, w2, b2, *, tb=2048):
    """x: (B, 1, in_features) f32 -> (B, num_classes) f32.

    Weights are stored transposed, i.e. w1: (in, hidden), w2: (hidden, classes);
    b1: (1, hidden), b2: (1, classes). No per-call padding/casting is done.
    """
    x2d = jnp.squeeze(x, axis=1)                      # glue: squeeze(1)
    B, in_f = x2d.shape
    hid = w1.shape[1]
    ncls = w2.shape[1]

    # Batch tile: multiple of 8 (f32 sublane), big enough to amortize per-step
    # overhead; if the grid would be a single step and B is moderate, split it
    # so both v7x TensorCores get work (no-op on single-TC v5e/v6e).
    TB = min(tb, _round_up(B, 8))
    if TB >= B and B >= 16:
        TB = _round_up(pl.cdiv(B, 2), 8)
    grid = (pl.cdiv(B, TB),)

    cost = pl.CostEstimate(
        flops=2 * B * (in_f * hid + hid * ncls),
        transcendentals=0,
        bytes_accessed=4 * (B * in_f                                   # x read
                            + grid[0] * (in_f * hid + hid
                                         + hid * ncls + ncls)          # params
                            + B * ncls),                               # out
    )

    return pl.pallas_call(
        mlp_kernel,
        out_shape=jax.ShapeDtypeStruct((B, ncls), jnp.float32),
        grid=grid,
        in_specs=[
            pl.BlockSpec((TB, in_f), lambda i: (i, 0)),    # x: batch-tiled, pipelined
            pl.BlockSpec((in_f, hid), lambda i: (0, 0)),   # params: VMEM-resident
            pl.BlockSpec((1, hid), lambda i: (0, 0)),
            pl.BlockSpec((hid, ncls), lambda i: (0, 0)),
            pl.BlockSpec((1, ncls), lambda i: (0, 0)),
        ],
        out_specs=pl.BlockSpec((TB, ncls), lambda i: (i, 0)),  # un-padded store
        compiler_params=pltpu.CompilerParams(
            dimension_semantics=("parallel",),             # dual-TC on v7x
        ),
        cost_estimate=cost,
    )(x2d, w1, b1, w2, b2)


def init_params(key, input_size=3, hidden_size=64, num_classes=4):
    """Deterministic init mimicking nn.Linear's uniform(-1/sqrt(fan_in), ...).

    Weights are built once, already in the layout the kernel wants (transposed,
    f32) — nothing is re-padded/re-cast per forward call.
    """
    k1, k2, k3, k4 = jax.random.split(key, 4)
    bound1 = 1.0 / jnp.sqrt(input_size)
    bound2 = 1.0 / jnp.sqrt(hidden_size)
    w1 = jax.random.uniform(k1, (input_size, hidden_size), jnp.float32,
                            -bound1, bound1)
    b1 = jax.random.uniform(k2, (1, hidden_size), jnp.float32, -bound1, bound1)
    w2 = jax.random.uniform(k3, (hidden_size, num_classes), jnp.float32,
                            -bound2, bound2)
    b2 = jax.random.uniform(k4, (1, num_classes), jnp.float32, -bound2, bound2)
    return w1, b1, w2, b2


if __name__ == "__main__":
    key = jax.random.PRNGKey(0)
    kx, kp = jax.random.split(key)

    B, input_size, hidden_size, num_classes = 8, 1, 64, 4
    # Match the module defaults: input_size=3, hidden=64, classes=4.
    input_size = 3
    x = jax.random.normal(kx, (B, 1, input_size), jnp.float32)
    w1, b1, w2, b2 = init_params(kp, input_size, hidden_size, num_classes)

    out = trained_model_forward(x, w1, b1, w2, b2)
    out = jax.block_until_ready(out)
    assert out.shape == (B, num_classes)

    # Full-f32 PyTorch-equivalent reference.
    ref = jnp.maximum(jnp.squeeze(x, 1) @ w1 + b1, 0.0) @ w2 + b2
    assert jnp.allclose(out, ref, atol=1e-2, rtol=1e-2), (out, ref)

    print("KERNEL_OK")
</pallas_src>

<mosaic_0001>
module attributes {stable_mosaic.version = 11 : i64} {
  func.func @mlp_kernel(%arg0: i32, %arg1: memref<8x3xf32, #tpu.memory_space<vmem>>, %arg2: memref<3x64xf32, #tpu.memory_space<vmem>>, %arg3: memref<1x64xf32, #tpu.memory_space<vmem>>, %arg4: memref<64x4xf32, #tpu.memory_space<vmem>>, %arg5: memref<1x4xf32, #tpu.memory_space<vmem>>, %arg6: memref<8x4xf32, #tpu.memory_space<vmem>>) attributes {dimension_semantics = [#tpu.dimension_semantics<parallel>], iteration_bounds = array<i64: 1>, scalar_prefetch = 0 : i64, scratch_operands = 0 : i64, tpu.core_type = #tpu.core_type<tc>, window_params = [{transform_indices = @transform_0, window_bounds = array<i64: 8, 3>}, {pipeline_mode = #tpu.pipeline_mode<synchronous>, transform_indices = @transform_1, window_bounds = array<i64: 3, 64>}, {pipeline_mode = #tpu.pipeline_mode<synchronous>, transform_indices = @transform_2, window_bounds = array<i64: 1, 64>}, {pipeline_mode = #tpu.pipeline_mode<synchronous>, transform_indices = @transform_3, window_bounds = array<i64: 64, 4>}, {pipeline_mode = #tpu.pipeline_mode<synchronous>, transform_indices = @transform_4, window_bounds = array<i64: 1, 4>}, {transform_indices = @transform_5, window_bounds = array<i64: 8, 4>}]} {
    %c0 = arith.constant 0 : index
    %c0_0 = arith.constant 0 : index
    %0 = vector.load %arg1[%c0, %c0_0] : memref<8x3xf32, #tpu.memory_space<vmem>>, vector<8x3xf32>
    %c0_1 = arith.constant 0 : index
    %c0_2 = arith.constant 0 : index
    %1 = vector.load %arg2[%c0_1, %c0_2] : memref<3x64xf32, #tpu.memory_space<vmem>>, vector<3x64xf32>
    %c0_3 = arith.constant 0 : index
    %c0_4 = arith.constant 0 : index
    %2 = vector.load %arg3[%c0_3, %c0_4] : memref<1x64xf32, #tpu.memory_space<vmem>>, vector<1x64xf32>
    %3 = vector.shape_cast %2 : vector<1x64xf32> to vector<1x64xf32>
    %4 = vector.broadcast %3 : vector<1x64xf32> to vector<8x64xf32>
    %5 = vector.extract_strided_slice %0 {offsets = [0, 0], sizes = [8, 1], strides = [1, 1]} : vector<8x3xf32> to vector<8x1xf32>
    %6 = vector.extract_strided_slice %1 {offsets = [0, 0], sizes = [1, 64], strides = [1, 1]} : vector<3x64xf32> to vector<1x64xf32>
    %7 = vector.broadcast %5 : vector<8x1xf32> to vector<8x64xf32>
    %8 = vector.broadcast %6 : vector<1x64xf32> to vector<8x64xf32>
    %9 = arith.mulf %7, %8 : vector<8x64xf32>
    %10 = arith.addf %4, %9 : vector<8x64xf32>
    %11 = vector.extract_strided_slice %0 {offsets = [0, 1], sizes = [8, 1], strides = [1, 1]} : vector<8x3xf32> to vector<8x1xf32>
    %12 = vector.extract_strided_slice %1 {offsets = [1, 0], sizes = [1, 64], strides = [1, 1]} : vector<3x64xf32> to vector<1x64xf32>
    %13 = vector.broadcast %11 : vector<8x1xf32> to vector<8x64xf32>
    %14 = vector.broadcast %12 : vector<1x64xf32> to vector<8x64xf32>
    %15 = arith.mulf %13, %14 : vector<8x64xf32>
    %16 = arith.addf %10, %15 : vector<8x64xf32>
    %17 = vector.extract_strided_slice %0 {offsets = [0, 2], sizes = [8, 1], strides = [1, 1]} : vector<8x3xf32> to vector<8x1xf32>
    %18 = vector.extract_strided_slice %1 {offsets = [2, 0], sizes = [1, 64], strides = [1, 1]} : vector<3x64xf32> to vector<1x64xf32>
    %19 = vector.broadcast %17 : vector<8x1xf32> to vector<8x64xf32>
    %20 = vector.broadcast %18 : vector<1x64xf32> to vector<8x64xf32>
    %21 = arith.mulf %19, %20 : vector<8x64xf32>
    %22 = arith.addf %16, %21 : vector<8x64xf32>
    %cst = arith.constant 0.000000e+00 : f32
    %23 = vector.broadcast %cst : f32 to vector<8x64xf32>
    %24 = arith.maximumf %22, %23 : vector<8x64xf32>
    %c0_5 = arith.constant 0 : index
    %c0_6 = arith.constant 0 : index
    %25 = vector.load %arg4[%c0_5, %c0_6] : memref<64x4xf32, #tpu.memory_space<vmem>>, vector<64x4xf32>
    %cst_7 = arith.constant dense<0.000000e+00> : vector<8x4xf32>
    %26 = tpu.matmul %24, %25, %cst_7 {dimension_numbers = #tpu.dot_dimension_numbers<[1], [0], [0], [1], [0, 0, 1, 1], [], []>} : vector<8x64xf32>, vector<64x4xf32>, vector<8x4xf32> -> vector<8x4xf32>
    %c0_8 = arith.constant 0 : index
    %c0_9 = arith.constant 0 : index
    %27 = vector.load %arg5[%c0_8, %c0_9] : memref<1x4xf32, #tpu.memory_space<vmem>>, vector<1x4xf32>
    %28 = vector.broadcast %27 : vector<1x4xf32> to vector<8x4xf32>
    %29 = arith.addf %26, %28 : vector<8x4xf32>
    %c0_10 = arith.constant 0 : index
    %c0_11 = arith.constant 0 : index
    %30 = vector.load %arg6[%c0_10, %c0_11] : memref<8x4xf32, #tpu.memory_space<vmem>>, vector<8x4xf32>
    tpu.vector_store %arg6[%c0_10, %c0_11], %29 {strides = array<i32>} : memref<8x4xf32, #tpu.memory_space<vmem>>, vector<8x4xf32>,
    return
  }
  func.func @transform_0(%arg0: i32) -> (i32, i32) {
    %c0_i32 = arith.constant 0 : i32
    %c0_i32_0 = arith.constant 0 : i32
    return %arg0, %c0_i32 : i32, i32
  }
  func.func @transform_1(%arg0: i32) -> (i32, i32) {
    %c0_i32 = arith.constant 0 : i32
    %c0_i32_0 = arith.constant 0 : i32
    %c0_i32_1 = arith.constant 0 : i32
    return %c0_i32, %c0_i32_0 : i32, i32
  }
  func.func @transform_2(%arg0: i32) -> (i32, i32) {
    %c0_i32 = arith.constant 0 : i32
    %c0_i32_0 = arith.constant 0 : i32
    %c0_i32_1 = arith.constant 0 : i32
    return %c0_i32, %c0_i32_0 : i32, i32
  }
  func.func @transform_3(%arg0: i32) -> (i32, i32) {
    %c0_i32 = arith.constant 0 : i32
    %c0_i32_0 = arith.constant 0 : i32
    %c0_i32_1 = arith.constant 0 : i32
    return %c0_i32, %c0_i32_0 : i32, i32
  }
  func.func @transform_4(%arg0: i32) -> (i32, i32) {
    %c0_i32 = arith.constant 0 : i32
    %c0_i32_0 = arith.constant 0 : i32
    %c0_i32_1 = arith.constant 0 : i32
    return %c0_i32, %c0_i32_0 : i32, i32
  }
  func.func @transform_5(%arg0: i32) -> (i32, i32) {
    %c0_i32 = arith.constant 0 : i32
    %c0_i32_0 = arith.constant 0 : i32
    return %arg0, %c0_i32 : i32, i32
  }
}

</mosaic_0001>

<llo_original>
// kernel: trained_model_forward.1
$region0: #{trained_model_forward.1}
  #allocation0 [shape = 'u32[]', space=smem, size = 0x4, offset = 0x4, fixed_abs, tag = 'smem constant byte address 0x4 - core index']
  #allocation1 [shape = 'u32[144,128]{1,0:T(1,128)}', space=vmem, size = 0x12000, scoped, tag = 'internal scratch']
  %s0 = inlined_call_operand.vmem [shape: f32[8,3], index: 0, kind: input, shape index: {}]
  %s1 = inlined_call_operand.vmem [shape: f32[3,64], index: 1, kind: input, shape index: {}]
  %s2 = inlined_call_operand.vmem [shape: f32[1,64], index: 2, kind: input, shape index: {}]
  %s3 = inlined_call_operand.vmem [shape: f32[64,4], index: 3, kind: input, shape index: {}]
  %s4 = inlined_call_operand.vmem [shape: f32[1,4], index: 4, kind: input, shape index: {}]
  %s5 = inlined_call_operand.vmem [shape: f32[8,4], index: 5, kind: output, shape index: {}]
  %s6 = sld [smem:[#allocation0]]
  $region30: #{trained_model_forward.1} parent=0
    _
  %s8 = ssub.s32 1, %s6
  %s9 = scalar_select 0, %s8, %s6
  // Predicated region
  $region2: #{trained_model_forward.1} parent=0 // pred_check
    _
  $region3: #{trained_model_forward.1} parent=0 // pred_check_branch
    %11 = sbr.rel (0) target = $region5
  $region4: #{trained_model_forward.1} parent=0 // pred_region
    _
  $region5: #{trained_model_forward.1} parent=0 // pred_fallthru
    _
  // Predicated region
  $region6: #{trained_model_forward.1} parent=0 // pred_check
    _
  $region7: #{trained_model_forward.1} parent=0 // pred_check_branch
    %13 = sbr.rel (0) target = $region9
  $region8: #{trained_model_forward.1} parent=0 // pred_region
    _
  $region9: #{trained_model_forward.1} parent=0 // pred_fallthru
    _
  // Predicated region
  $region10: #{trained_model_forward.1} parent=0 // pred_check
    _
  $region11: #{trained_model_forward.1} parent=0 // pred_check_branch
    %15 = sbr.rel (0) target = $region13
  $region12: #{trained_model_forward.1} parent=0 // pred_region
    _
  $region13: #{trained_model_forward.1} parent=0 // pred_fallthru
    _
  // Predicated region
  $region14: #{trained_model_forward.1} parent=0 // pred_check
    _
  $region15: #{trained_model_forward.1} parent=0 // pred_check_branch
    %17 = sbr.rel (0) target = $region17
  $region16: #{trained_model_forward.1} parent=0 // pred_region
    _
  $region17: #{trained_model_forward.1} parent=0 // pred_fallthru
    _
  // Predicated region
  $region18: #{trained_model_forward.1} parent=0 // pred_check
    _
  $region19: #{trained_model_forward.1} parent=0 // pred_check_branch
    %19 = sbr.rel (0) target = $region21
  $region20: #{trained_model_forward.1} parent=0 // pred_region
    _
  $region21: #{trained_model_forward.1} parent=0 // pred_fallthru
    _
  %v20 = vld [vmem:[%s0] sm:$0xff]
  %v21 = vld [vmem:[%s1] sm:$0x7]
  %v22 = vld [vmem:[%s2] sm:$0x1]
  %v24 = vlaneseq
  %v25 = vshrl.u32 %v24, 7
  %v26 = vsub.s32 0, %v25
  %v27 = vrot.slane %v22, %v26
  %30 = vset.pattern.permute.xlu0 0
  %31 = vperm.xlu0 %30, %v20
  %v32 = vpop.permute.xlu0 %31
  %v34 = vlaneseq
  %v35 = vshrl.u32 %v34, 7
  %v36 = vsub.s32 0, %v35
  %v37 = vrot.slane %v21, %v36
  %v38 = vmul.f32 %v32, %v37
  %v39 = vadd.f32 %v27, %v38
  %40 = vset.pattern.permute.xlu0 1
  %41 = vperm.xlu0 %40, %v20
  %v42 = vpop.permute.xlu0 %41
  %v44 = vlaneseq
  %v45 = vshrl.u32 %v44, 7
  %v46 = vsub.s32 1, %v45
  %v47 = vrot.slane %v21, %v46
  %v48 = vmul.f32 %v42, %v47
  %v49 = vadd.f32 %v39, %v48
  %50 = vset.pattern.permute.xlu0 2
  %51 = vperm.xlu0 %50, %v20
  %v52 = vpop.permute.xlu0 %51
  %v54 = vlaneseq
  %v55 = vshrl.u32 %v54, 7
  %v56 = vsub.s32 2, %v55
  %v57 = vrot.slane %v21, %v56
  %v58 = vmul.f32 %v52, %v57
  %v59 = vadd.f32 %v49, %v58
  %v60 = vmax.f32 %v59, 0.0
  %v61 = vld [vmem:[%s3] sm:$0xff]
  %v62 = vld [vmem:[%s3 + $0x8] sm:$0xff]
  %v63 = vld [vmem:[%s3 + $0x10] sm:$0xff]
  %v64 = vld [vmem:[%s3 + $0x18] sm:$0xff]
  %v65 = vld [vmem:[%s3 + $0x20] sm:$0xff]
  %v66 = vld [vmem:[%s3 + $0x28] sm:$0xff]
  %v67 = vld [vmem:[%s3 + $0x30] sm:$0xff]
  %v68 = vld [vmem:[%s3 + $0x38] sm:$0xff]
  %v69 = vld [vmem:[%s4] sm:$0x1]
  %v71 = vlaneseq
  %v72 = vshrl.u32 %v71, 7
  %v73 = vsub.s32 0, %v72
  %v74 = vrot.slane %v69, %v73
  %vm76 = vcmask 523264
  %v78 = vsel %vm76, %v60, 0
  %80 = vmatprep.subr.mxu0 0.0
  %81 = vmatpush1.msra.mxu0 0.0
  %82 = vmatprep.subr.mxu0 0.0
  %83 = vmatpush1.msra.mxu0 0.0
  %84 = vmatprep.subr.mxu0 0.0
  %85 = vmatpush1.msra.mxu0 0.0
  %86 = vmatprep.subr.mxu0 0.0
  %87 = vmatpush1.msra.mxu0 0.0
  %88 = vmatprep.subr.mxu0 0.0
  %89 = vmatpush1.msra.mxu0 0.0
  %90 = vmatprep.subr.mxu0 0.0
  %91 = vmatpush1.msra.mxu0 0.0
  %92 = vmatprep.subr.mxu0 0.0
  %93 = vmatpush1.msra.mxu0 0.0
  %94 = vmatprep.subr.mxu0 0.0
  %95 = vmatpush1.msra.mxu0 0.0
  %96 = vmatprep.subr.mxu0 0.0
  %97 = vmatpush1.msra.mxu0 %v68
  %98 = vmatprep.subr.mxu0 0.0
  %99 = vmatpush1.msra.mxu0 %v67
  %100 = vmatprep.subr.mxu0 0.0
  %101 = vmatpush1.msra.mxu0 %v66
  %102 = vmatprep.subr.mxu0 0.0
  %103 = vmatpush1.msra.mxu0 %v65
  %104 = vmatprep.subr.mxu0 0.0
  %105 = vmatpush1.msra.mxu0 %v64
  %106 = vmatprep.subr.mxu0 0.0
  %107 = vmatpush1.msra.mxu0 %v63
  %108 = vmatprep.subr.mxu0 0.0
  %109 = vmatpush1.msra.mxu0 %v62
  %110 = vmatprep.subr.mxu0 0.0
  %111 = vmatpush1.msra.mxu0 %v61
  %112 = vmatprep.subr.mxu0 0.0
  %113 = vmatpush2.msra.mxu0 0.0
  %114 = vmatprep.subr.mxu0 0.0
  %115 = vmatpush2.msra.mxu0 0.0
  %116 = vmatprep.subr.mxu0 0.0
  %117 = vmatpush2.msra.mxu0 0.0
  %118 = vmatprep.subr.mxu0 0.0
  %119 = vmatpush2.msra.mxu0 0.0
  %120 = vmatprep.subr.mxu0 0.0
  %121 = vmatpush2.msra.mxu0 0.0
  %122 = vmatprep.subr.mxu0 0.0
  %123 = vmatpush2.msra.mxu0 0.0
  %124 = vmatprep.subr.mxu0 0.0
  %125 = vmatpush2.msra.mxu0 0.0
  %126 = vmatprep.subr.mxu0 0.0
  %127 = vmatpush2.msra.mxu0 0.0
  %128 = vmatprep.subr.mxu0 0.0
  %129 = vmatpush2.msra.mxu0 0.0
  %130 = vmatprep.subr.mxu0 0.0
  %131 = vmatpush2.msra.mxu0 0.0
  %132 = vmatprep.subr.mxu0 0.0
  %133 = vmatpush2.msra.mxu0 0.0
  %134 = vmatprep.subr.mxu0 0.0
  %135 = vmatpush2.msra.mxu0 0.0
  %136 = vmatprep.subr.mxu0 0.0
  %137 = vmatpush2.msra.mxu0 0.0
  %138 = vmatprep.subr.mxu0 0.0
  %139 = vmatpush2.msra.mxu0 0.0
  %140 = vmatprep.subr.mxu0 0.0
  %141 = vmatpush2.msra.mxu0 0.0
  %142 = vmatprep.subr.mxu0 0.0
  %143 = vmatpush2.msra.mxu0 0.0
  %144 = vmatprep.mubr.f32.mxu0 0.0
  %145 = vmatmul.mubr.f32.gmra.mxu0 %v78
  %v146 = vpop.f32.mrf.mxu0
  %v147 = vadd.f32 %v74, %v146
  %v148 = vpop.f32.mrf.mxu0
  %149 = vdwg.mxu0
  %vm150 = vcmask 31744
  %151 = vst.msk [vmem:[%s5] sm:$0xff] %vm150, %v147
  // Predicated region
  $region22: #{trained_model_forward.1} parent=0 // pred_check
    _
  $region23: #{trained_model_forward.1} parent=0 // pred_check_branch
    %153 = sbr.rel (0) target = $region25
  $region24: #{trained_model_forward.1} parent=0 // pred_region
    _
  $region25: #{trained_model_forward.1} parent=0 // pred_fallthru
    _
  // Predicated region
  $region26: #{trained_model_forward.1} parent=0 // pred_check
    _
  $region27: #{trained_model_forward.1} parent=0 // pred_check_branch
    %155 = sbr.rel (0) target = $region29
  $region28: #{trained_model_forward.1} parent=0 // pred_region
    _
  $region29: #{trained_model_forward.1} parent=0 // pred_fallthru
    _

</llo_original>
